<compile_context>
chip_gen: v5e
topology: v5e:2x2
jax: 0.10.0
libtpu: 0.0.40
codegen_flags: <defaults>
</compile_context>

<pallas_src>
import math

import numpy as np
import jax
import jax.numpy as jnp
from jax.experimental import pallas as pl
from jax.experimental.pallas import tpu as pltpu

_TWO_PI = 2.0 * math.pi
_HALF_PI = 0.5 * math.pi


def _periodic_kernel(x_ref, sel_ref, phase_ref, out_ref):
    # x_ref:     (TB, F)        input features, native dtype
    # sel_ref:   (F, F*2E) f32  block-diagonal selector, pre-scaled by 2*pi
    # phase_ref: (1, F*2E) f32  0 on the cos lanes, pi/2 on the sin lanes
    # out_ref:   (TB, F*2E)     lane-dense flattened output
    x = x_ref[...].astype(jnp.float32)                       # (TB, F)
    # Tiny matmul on the MXU: expands each feature to its 2E-wide lane block
    # (already scaled by 2*pi) with no cross-lane reshape and no VPU bcast-mul.
    y = jnp.dot(x, sel_ref[...],
                preferred_element_type=jnp.float32,
                precision=jax.lax.Precision.HIGHEST)          # (TB, F*2E)
    # sin(t) == cos(t - pi/2): one transcendental per output element.
    out_ref[...] = jnp.cos(y - phase_ref[...]).astype(out_ref.dtype)


def _default_target_block_bytes():
    """Per-generation output-block-size target (bytes)."""
    try:
        kind = jax.devices()[0].device_kind.lower()
    except Exception:
        kind = ""
    if "v5e" in kind or "v5 lite" in kind or "v5lite" in kind:
        return 6 << 20    # v5e: 16 MiB default scoped VMEM -> keep 2x block small
    if "v6" in kind:
        return 8 << 20
    if "v7" in kind:
        return 12 << 20
    return 8 << 20        # unknown / other generations: safe middle ground


def periodic_forward(x, coefficients, *, flatten_output=False,
                     target_block_bytes=None, out_dtype=None):
    """Pallas implementation of Periodic.forward.

    x:            (..., n_features)
    coefficients: (n_features, emb_size)
    returns       (..., n_features, 2*emb_size), or (batch, -1) if flatten_output.
    """
    orig_shape = x.shape
    n_features, emb_size = coefficients.shape
    assert orig_shape[-1] == n_features, (orig_shape, coefficients.shape)

    batch = int(math.prod(orig_shape[:-1])) if len(orig_shape) > 1 else 1
    x2 = x.reshape(batch, n_features)

    if out_dtype is None:
        # Matches PyTorch promotion; pass out_dtype=jnp.bfloat16 to halve the
        # (output-writeback-bound) HBM traffic if the consumer tolerates it.
        out_dtype = jnp.promote_types(x.dtype, coefficients.dtype)
    e2 = 2 * emb_size
    flat = n_features * e2

    # ---- tiny wrapper-side constants (F x F*2E elements, negligible) --------
    coef = coefficients.astype(jnp.float32)
    coef2 = _TWO_PI * jnp.concatenate([coef, coef], axis=-1)          # (F, 2E)
    eye = jnp.eye(n_features, dtype=jnp.float32)                      # (F, F)
    sel = (eye[:, :, None] * coef2[None, :, :]).reshape(n_features, flat)
    phase_blk = jnp.concatenate(
        [jnp.zeros((emb_size,), jnp.float32),
         jnp.full((emb_size,), _HALF_PI, jnp.float32)])               # (2E,)
    phase = jnp.tile(phase_blk, n_features).reshape(1, flat)          # (1, F*2E)

    # ---- batch-tile selection ------------------------------------------------
    if target_block_bytes is None:
        target_block_bytes = _default_target_block_bytes()
    row_bytes = flat * np.dtype(out_dtype).itemsize
    if batch <= 8:
        tb = batch
    else:
        # Cap by target output-block bytes (multiple of 8 rows) ...
        tb_bytes = max(8, (target_block_bytes // row_bytes) // 8 * 8)
        # ... and keep >= 4 grid tiles so the "parallel" axis has work to shard
        # across v7x's two TensorCores.
        tb_split = max(8, ((-(-batch // 4)) + 7) // 8 * 8)
        tb = max(8, min(batch, tb_bytes, tb_split))
    grid = (pl.cdiv(batch, tb),)

    out_block_bytes = tb * row_bytes
    vmem_limit = int(min(max(2 * out_block_bytes + (4 << 20), 16 << 20), 48 << 20))

    out = pl.pallas_call(
        _periodic_kernel,
        out_shape=jax.ShapeDtypeStruct((batch, flat), out_dtype),
        grid_spec=pltpu.PrefetchScalarGridSpec(
            num_scalar_prefetch=0,
            grid=grid,
            in_specs=[
                pl.BlockSpec((tb, n_features), lambda i: (i, 0)),
                pl.BlockSpec((n_features, flat), lambda i: (0, 0)),
                pl.BlockSpec((1, flat), lambda i: (0, 0)),
            ],
            out_specs=pl.BlockSpec((tb, flat), lambda i: (i, 0)),
        ),
        compiler_params=pltpu.CompilerParams(
            dimension_semantics=("parallel",),
            vmem_limit_bytes=vmem_limit,
        ),
    )(x2, sel, phase)

    if flatten_output:
        if len(orig_shape) <= 2:
            return out                                    # already (B, F*2E)
        return out.reshape(orig_shape[0], -1)             # metadata reshape
    return out.reshape(orig_shape[:-1] + (n_features, e2))


if __name__ == "__main__":
    key = jax.random.PRNGKey(0)
    k_coef, k_x, k_x2 = jax.random.split(key, 3)

    # Small shapes consistent with the module: n_features=4, emb_size=64.
    n_features, emb_size, sigma = 4, 64, 0.05
    batch = 8

    coefficients = sigma * jax.random.normal(
        k_coef, (n_features, emb_size), dtype=jnp.float32)
    x = jax.random.normal(k_x, (batch, n_features), dtype=jnp.float32)

    out = periodic_forward(x, coefficients, flatten_output=False)
    jax.block_until_ready(out)

    # Reference (plain JAX, mirrors the PyTorch forward).
    z = _TWO_PI * coefficients[None] * x[..., None]             # (B, F, E)
    ref = jnp.concatenate([jnp.cos(z), jnp.sin(z)], axis=-1)    # (B, F, 2E)
    assert out.shape == ref.shape, (out.shape, ref.shape)
    assert jnp.allclose(out, ref, rtol=1e-5, atol=1e-5), float(
        jnp.max(jnp.abs(out - ref)))

    # flatten_output path (2-D kernel output returned directly).
    out_flat = periodic_forward(x, coefficients, flatten_output=True)
    jax.block_until_ready(out_flat)
    assert out_flat.shape == (batch, n_features * 2 * emb_size)
    assert jnp.allclose(out_flat, ref.reshape(batch, -1), rtol=1e-5, atol=1e-5)

    # Multi-tile path (grid > 1, tb clamp, boundary handling).
    batch2 = 24
    xb = jax.random.normal(k_x2, (batch2, n_features), dtype=jnp.float32)
    out2 = periodic_forward(xb, coefficients)
    jax.block_until_ready(out2)
    z2 = _TWO_PI * coefficients[None] * xb[..., None]
    ref2 = jnp.concatenate([jnp.cos(z2), jnp.sin(z2)], axis=-1)
    assert jnp.allclose(out2, ref2, rtol=1e-5, atol=1e-5), float(
        jnp.max(jnp.abs(out2 - ref2)))

    print("KERNEL_OK")
</pallas_src>

<mosaic_0001>
module attributes {stable_mosaic.version = 11 : i64} {
  func.func @_periodic_kernel(%arg0: i32, %arg1: memref<8x4xf32, #tpu.memory_space<vmem>>, %arg2: memref<4x512xf32, #tpu.memory_space<vmem>>, %arg3: memref<1x512xf32, #tpu.memory_space<vmem>>, %arg4: memref<8x512xf32, #tpu.memory_space<vmem>>) attributes {dimension_semantics = [#tpu.dimension_semantics<parallel>], iteration_bounds = array<i64: 1>, scalar_prefetch = 0 : i64, scratch_operands = 0 : i64, tpu.core_type = #tpu.core_type<tc>, window_params = [{transform_indices = @transform_0, window_bounds = array<i64: 8, 4>}, {pipeline_mode = #tpu.pipeline_mode<synchronous>, transform_indices = @transform_1, window_bounds = array<i64: 4, 512>}, {pipeline_mode = #tpu.pipeline_mode<synchronous>, transform_indices = @transform_2, window_bounds = array<i64: 1, 512>}, {transform_indices = @transform_3, window_bounds = array<i64: 8, 512>}]} {
    %c0 = arith.constant 0 : index
    %c0_0 = arith.constant 0 : index
    %0 = vector.load %arg1[%c0, %c0_0] : memref<8x4xf32, #tpu.memory_space<vmem>>, vector<8x4xf32>
    %c0_1 = arith.constant 0 : index
    %c0_2 = arith.constant 0 : index
    %1 = vector.load %arg2[%c0_1, %c0_2] : memref<4x512xf32, #tpu.memory_space<vmem>>, vector<4x512xf32>
    %cst = arith.constant dense<0.000000e+00> : vector<8x512xf32>
    %2 = tpu.matmul %0, %1, %cst {dimension_numbers = #tpu.dot_dimension_numbers<[1], [0], [0], [1], [0, 0, 1, 1], [], []>, precision = #tpu.contract_precision<fp32>} : vector<8x4xf32>, vector<4x512xf32>, vector<8x512xf32> -> vector<8x512xf32>
    %c0_3 = arith.constant 0 : index
    %c0_4 = arith.constant 0 : index
    %3 = vector.load %arg3[%c0_3, %c0_4] : memref<1x512xf32, #tpu.memory_space<vmem>>, vector<1x512xf32>
    %4 = vector.broadcast %3 : vector<1x512xf32> to vector<8x512xf32>
    %5 = arith.subf %2, %4 : vector<8x512xf32>
    %6 = math.cos %5 : vector<8x512xf32>
    %c0_5 = arith.constant 0 : index
    %c0_6 = arith.constant 0 : index
    %7 = vector.load %arg4[%c0_5, %c0_6] : memref<8x512xf32, #tpu.memory_space<vmem>>, vector<8x512xf32>
    tpu.vector_store %arg4[%c0_5, %c0_6], %6 {strides = array<i32>} : memref<8x512xf32, #tpu.memory_space<vmem>>, vector<8x512xf32>,
    return
  }
  func.func @transform_0(%arg0: i32) -> (i32, i32) {
    %c0_i32 = arith.constant 0 : i32
    %c0_i32_0 = arith.constant 0 : i32
    return %arg0, %c0_i32 : i32, i32
  }
  func.func @transform_1(%arg0: i32) -> (i32, i32) {
    %c0_i32 = arith.constant 0 : i32
    %c0_i32_0 = arith.constant 0 : i32
    %c0_i32_1 = arith.constant 0 : i32
    return %c0_i32, %c0_i32_0 : i32, i32
  }
  func.func @transform_2(%arg0: i32) -> (i32, i32) {
    %c0_i32 = arith.constant 0 : i32
    %c0_i32_0 = arith.constant 0 : i32
    %c0_i32_1 = arith.constant 0 : i32
    return %c0_i32, %c0_i32_0 : i32, i32
  }
  func.func @transform_3(%arg0: i32) -> (i32, i32) {
    %c0_i32 = arith.constant 0 : i32
    %c0_i32_0 = arith.constant 0 : i32
    return %arg0, %c0_i32 : i32, i32
  }
}

</mosaic_0001>

<llo_original>
// kernel: tpu_custom_call.1
$region0: #{tpu_custom_call.1}
  #allocation0 [shape = 'u32[]', space=smem, size = 0x4, offset = 0x4, fixed_abs, tag = 'smem constant byte address 0x4 - core index']
  #allocation1 [shape = 'u32[72,128]{1,0:T(1,128)}', space=vmem, size = 0x9000, scoped, tag = 'internal scratch']
  %s0 = inlined_call_operand.vmem [shape: f32[8,4], index: 0, kind: input, shape index: {}]
  %s1 = inlined_call_operand.hbm [shape: f32[4,512], index: 1, kind: input, shape index: {}]
  %s2 = inlined_call_operand.vmem [shape: f32[1,512], index: 2, kind: input, shape index: {}]
  %s3 = inlined_call_operand.hbm [shape: f32[8,512], index: 3, kind: output, shape index: {}]
  %s4 = sld [smem:[#allocation0]]
  $region26: #{tpu_custom_call.1} parent=0
    _
  %s6 = ssub.s32 1, %s4
  %s7 = scalar_select 0, %s6, %s4
  $region1: #{tpu_custom_call.1} parent=0
    #allocation2 [shape = 'u8[8192]{0}', space=vmem, size = 0x2000, scoped, tag = 'input window, operand 1, single buffered']
    #allocation3 [shape = 's32[1]{0}', space=sflag, size = 0x4, scoped, tag = 'scoped memory for tpu_custom_call.1']
    #allocation4 [shape = 's32[1]{0}', space=sflag, size = 0x4, scoped, tag = 'scoped memory for tpu_custom_call.1']
    #allocation5 [shape = 'u8[16384]{0}', space=vmem, size = 0x4000, scoped, tag = 'output window, operand 0, single buffered']
    %8 = vsyncpa [#allocation3], 0
    %9 = vsyncpa [#allocation4], 0
    // Predicated region
    $region2: #{tpu_custom_call.1} parent=1 // pred_check
      _
    $region3: #{tpu_custom_call.1} parent=1 // pred_check_branch
      %11 = sbr.rel (0) target = $region5
    $region4: #{tpu_custom_call.1} parent=1 // pred_region
      _
    $region5: #{tpu_custom_call.1} parent=1 // pred_fallthru
      _
    // Predicated region
    $region6: #{tpu_custom_call.1} parent=1 // pred_check
      _
    $region7: #{tpu_custom_call.1} parent=1 // pred_check_branch
      %13 = sbr.rel (0) target = $region9
    $region8: #{tpu_custom_call.1} parent=1 // pred_region
      %15 = vsyncadd [#allocation3], 0
      %s17 = sshll.u32 %s1, 4
      %s18 = int_to_ptr.hbm [resolvable:$true] %s17
      %s19 = sshll.u32 [#allocation2], 4
      %s20 = int_to_ptr.vmem [resolvable:$true] %s19
      %22 = dma.hbm_to_vmem [thread:$0]  %s18, 256, %s20, [#allocation3]
    $region9: #{tpu_custom_call.1} parent=1 // pred_fallthru
      _
    // Predicated region
    $region10: #{tpu_custom_call.1} parent=1 // pred_check
      _
    $region11: #{tpu_custom_call.1} parent=1 // pred_check_branch
      %24 = sbr.rel (0) target = $region13
    $region12: #{tpu_custom_call.1} parent=1 // pred_region
      _
    $region13: #{tpu_custom_call.1} parent=1 // pred_fallthru
      _
    // Predicated region
    $region14: #{tpu_custom_call.1} parent=1 // pred_check
      _
    $region15: #{tpu_custom_call.1} parent=1 // pred_check_branch
      %26 = sbr.rel (0) target = $region17
    $region16: #{tpu_custom_call.1} parent=1 // pred_region
      %28 = dma.done [#allocation3], 256
    $region17: #{tpu_custom_call.1} parent=1 // pred_fallthru
      _
    %v29 = vld [vmem:[%s0] sm:$0xff]
    %v30 = vld [vmem:[#allocation2] sm:$0xff]
    %v31 = vld [vmem:[#allocation2 + $0x8] sm:$0xff]
    %34 = vst [vmem:[#allocation1] ss:$2 sm:$0xff] %v30
    %s35 = scalar_lea.vmem [#allocation1], 16
    %36 = vst [vmem:[%s35] ss:$2 sm:$0xff] %v31
    %v37 = vld.sshfl [vmem:[#allocation1] sm:$0xff pattern:$0x75316420]
    %v38 = vld.sshfl [vmem:[#allocation1 + $0x8] sm:$0xff pattern:$0x75316420]
    %v39 = vld.sshfl [vmem:[#allocation1 + $0x10] sm:$0xff pattern:$0x75316420]
    %v40 = vld.sshfl [vmem:[#allocation1 + $0x18] sm:$0xff pattern:$0x75316420]
    %vm41 = vcmask 31744
    %v43 = vsel %vm41, %v29, 0
    %vm45 = vcmask 1043456
    %v46 = vsel %vm45, %v37, 0
    %v48 = vsel %vm45, %v38, 0
    %v50 = vsel %vm45, %v39, 0
    %v52 = vsel %vm45, %v40, 0
    %54 = vmatpush.msra.mxu0 0.0
    %55 = vmatpush.msra.mxu0 0.0
    %56 = vmatpush.msra.mxu0 0.0
    %57 = vmatpush.msra.mxu0 0.0
    %58 = vmatpush.msra.mxu0 0.0
    %59 = vmatpush.msra.mxu0 0.0
    %60 = vmatpush.msra.mxu0 0.0
    %61 = vmatpush.msra.mxu0 0.0
    %62 = vmatpush.msra.mxu0 0.0
    %63 = vmatpush.msra.mxu0 0.0
    %64 = vmatpush.msra.mxu0 0.0
    %65 = vmatpush.msra.mxu0 0.0
    %66 = vmatpush.msra.mxu0 0.0
    %67 = vmatpush.msra.mxu0 0.0
    %68 = vmatpush.msra.mxu0 0.0
    %v69 = vand.u32 %v46, 4294901760
    %70 = vmatpush.msra.mxu0 %v69
    %v71 = vand.u32 %v43, 4294901760
    %v72 = vsub.f32 %v43, %v71
    %v73 = vand.u32 %v72, 4294901760
    %v74 = vsub.f32 %v72, %v73
    %v75 = vand.u32 %v74, 4294901760
    %76 = vmatmul.f32.gmra.mxu0 %v75
    %v77 = vpop.f32.mrf.mxu0
    %v78 = vadd.f32 0.0, %v77
    %79 = vdwg.mxu0
    %80 = vmatpush.msra.mxu0 0.0
    %81 = vmatpush.msra.mxu0 0.0
    %82 = vmatpush.msra.mxu0 0.0
    %83 = vmatpush.msra.mxu0 0.0
    %84 = vmatpush.msra.mxu0 0.0
    %85 = vmatpush.msra.mxu0 0.0
    %86 = vmatpush.msra.mxu0 0.0
    %87 = vmatpush.msra.mxu0 0.0
    %88 = vmatpush.msra.mxu0 0.0
    %89 = vmatpush.msra.mxu0 0.0
    %90 = vmatpush.msra.mxu0 0.0
    %91 = vmatpush.msra.mxu0 0.0
    %92 = vmatpush.msra.mxu0 0.0
    %93 = vmatpush.msra.mxu0 0.0
    %94 = vmatpush.msra.mxu0 0.0
    %v95 = vand.u32 %v46, 4294901760
    %v96 = vsub.f32 %v46, %v95
    %v97 = vand.u32 %v96, 4294901760
    %v98 = vsub.f32 %v96, %v97
    %v99 = vand.u32 %v98, 4294901760
    %100 = vmatpush.msra.mxu0 %v99
    %v101 = vand.u32 %v43, 4294901760
    %102 = vmatmul.f32.gmra.mxu0 %v101
    %v103 = vpop.f32.mrf.mxu0
    %v104 = vadd.f32 %v78, %v103
    %105 = vdwg.mxu0
    %106 = vmatpush.msra.mxu0 0.0
    %107 = vmatpush.msra.mxu0 0.0
    %108 = vmatpush.msra.mxu0 0.0
    %109 = vmatpush.msra.mxu0 0.0
    %110 = vmatpush.msra.mxu0 0.0
    %111 = vmatpush.msra.mxu0 0.0
    %112 = vmatpush.msra.mxu0 0.0
    %113 = vmatpush.msra.mxu0 0.0
    %114 = vmatpush.msra.mxu0 0.0
    %115 = vmatpush.msra.mxu0 0.0
    %116 = vmatpush.msra.mxu0 0.0
    %117 = vmatpush.msra.mxu0 0.0
    %118 = vmatpush.msra.mxu0 0.0
    %119 = vmatpush.msra.mxu0 0.0
    %120 = vmatpush.msra.mxu0 0.0
    %v121 = vand.u32 %v46, 4294901760
    %v122 = vsub.f32 %v46, %v121
    %123 = vmatpush.msra.mxu0 %v122
    %v124 = vand.u32 %v43, 4294901760
    %v125 = vsub.f32 %v43, %v124
    %126 = vmatmul.f32.gmra.mxu0 %v125
    %v127 = vpop.f32.mrf.mxu0
    %v128 = vadd.f32 %v104, %v127
    %129 = vdwg.mxu0
    %130 = vmatpush.msra.mxu0 0.0
    %131 = vmatpush.msra.mxu0 0.0
    %132 = vmatpush.msra.mxu0 0.0
    %133 = vmatpush.msra.mxu0 0.0
    %134 = vmatpush.msra.mxu0 0.0
    %135 = vmatpush.msra.mxu0 0.0
    %136 = vmatpush.msra.mxu0 0.0
    %137 = vmatpush.msra.mxu0 0.0
    %138 = vmatpush.msra.mxu0 0.0
    %139 = vmatpush.msra.mxu0 0.0
    %140 = vmatpush.msra.mxu0 0.0
    %141 = vmatpush.msra.mxu0 0.0
    %142 = vmatpush.msra.mxu0 0.0
    %143 = vmatpush.msra.mxu0 0.0
    %144 = vmatpush.msra.mxu0 0.0
    %v145 = vand.u32 %v46, 4294901760
    %146 = vmatpush.msra.mxu0 %v145
    %v147 = vand.u32 %v43, 4294901760
    %v148 = vsub.f32 %v43, %v147
    %v149 = vand.u32 %v148, 4294901760
    %150 = vmatmul.f32.gmra.mxu0 %v149
    %v151 = vpop.f32.mrf.mxu0
    %v152 = vadd.f32 %v128, %v151
    %153 = vdwg.mxu0
    %154 = vmatpush.msra.mxu0 0.0
    %155 = vmatpush.msra.mxu0 0.0
    %156 = vmatpush.msra.mxu0 0.0
    %157 = vmatpush.msra.mxu0 0.0
    %158 = vmatpush.msra.mxu0 0.0
    %159 = vmatpush.msra.mxu0 0.0
    %160 = vmatpush.msra.mxu0 0.0
    %161 = vmatpush.msra.mxu0 0.0
    %162 = vmatpush.msra.mxu0 0.0
    %163 = vmatpush.msra.mxu0 0.0
    %164 = vmatpush.msra.mxu0 0.0
    %165 = vmatpush.msra.mxu0 0.0
    %166 = vmatpush.msra.mxu0 0.0
    %167 = vmatpush.msra.mxu0 0.0
    %168 = vmatpush.msra.mxu0 0.0
    %v169 = vand.u32 %v46, 4294901760
    %v170 = vsub.f32 %v46, %v169
    %v171 = vand.u32 %v170, 4294901760
    %172 = vmatpush.msra.mxu0 %v171
    %v173 = vand.u32 %v43, 4294901760
    %174 = vmatmul.f32.gmra.mxu0 %v173
    %v175 = vpop.f32.mrf.mxu0
    %v176 = vadd.f32 %v152, %v175
    %177 = vdwg.mxu0
    %178 = vmatpush.msra.mxu0 0.0
    %179 = vmatpush.msra.mxu0 0.0
    %180 = vmatpush.msra.mxu0 0.0
    %181 = vmatpush.msra.mxu0 0.0
    %182 = vmatpush.msra.mxu0 0.0
    %183 = vmatpush.msra.mxu0 0.0
    %184 = vmatpush.msra.mxu0 0.0
    %185 = vmatpush.msra.mxu0 0.0
    %186 = vmatpush.msra.mxu0 0.0
    %187 = vmatpush.msra.mxu0 0.0
    %188 = vmatpush.msra.mxu0 0.0
    %189 = vmatpush.msra.mxu0 0.0
    %190 = vmatpush.msra.mxu0 0.0
    %191 = vmatpush.msra.mxu0 0.0
    %192 = vmatpush.msra.mxu0 0.0
    %v193 = vand.u32 %v46, 4294901760
    %194 = vmatpush.msra.mxu0 %v193
    %v195 = vand.u32 %v43, 4294901760
    %196 = vmatmul.f32.gmra.mxu0 %v195
    %v197 = vpop.f32.mrf.mxu0
    %v198 = vadd.f32 %v176, %v197
    %199 = vdwg.mxu0
    %200 = vmatpush.msra.mxu0 0.0
    %201 = vmatpush.msra.mxu0 0.0
    %202 = vmatpush.msra.mxu0 0.0
    %203 = vmatpush.msra.mxu0 0.0
    %204 = vmatpush.msra.mxu0 0.0
    %205 = vmatpush.msra.mxu0 0.0
    %206 = vmatpush.msra.mxu0 0.0
    %207 = vmatpush.msra.mxu0 0.0
    %208 = vmatpush.msra.mxu0 0.0
    %209 = vmatpush.msra.mxu0 0.0
    %210 = vmatpush.msra.mxu0 0.0
    %211 = vmatpush.msra.mxu0 0.0
    %212 = vmatpush.msra.mxu0 0.0
    %213 = vmatpush.msra.mxu0 0.0
    %214 = vmatpush.msra.mxu0 0.0
    %v215 = vand.u32 %v48, 4294901760
    %216 = vmatpush.msra.mxu0 %v215
    %v217 = vand.u32 %v43, 4294901760
    %v218 = vsub.f32 %v43, %v217
    %v219 = vand.u32 %v218, 4294901760
    %v220 = vsub.f32 %v218, %v219
    %v221 = vand.u32 %v220, 4294901760
    %222 = vmatmul.f32.gmra.mxu0 %v221
    %v223 = vpop.f32.mrf.mxu0
    %v224 = vadd.f32 0.0, %v223
    %225 = vdwg.mxu0
    %226 = vmatpush.msra.mxu0 0.0
    %227 = vmatpush.msra.mxu0 0.0
    %228 = vmatpush.msra.mxu0 0.0
    %229 = vmatpush.msra.mxu0 0.0
    %230 = vmatpush.msra.mxu0 0.0
    %231 = vmatpush.msra.mxu0 0.0
    %232 = vmatpush.msra.mxu0 0.0
    %233 = vmatpush.msra.mxu0 0.0
    %234 = vmatpush.msra.mxu0 0.0
    %235 = vmatpush.msra.mxu0 0.0
    %236 = vmatpush.msra.mxu0 0.0
    %237 = vmatpush.msra.mxu0 0.0
    %238 = vmatpush.msra.mxu0 0.0
    %239 = vmatpush.msra.mxu0 0.0
    %240 = vmatpush.msra.mxu0 0.0
    %v241 = vand.u32 %v48, 4294901760
    %v242 = vsub.f32 %v48, %v241
    %v243 = vand.u32 %v242, 4294901760
    %v244 = vsub.f32 %v242, %v243
    %v245 = vand.u32 %v244, 4294901760
    %246 = vmatpush.msra.mxu0 %v245
    %v247 = vand.u32 %v43, 4294901760
    %248 = vmatmul.f32.gmra.mxu0 %v247
    %v249 = vpop.f32.mrf.mxu0
    %v250 = vadd.f32 %v224, %v249
    %251 = vdwg.mxu0
    %252 = vmatpush.msra.mxu0 0.0
    %253 = vmatpush.msra.mxu0 0.0
    %254 = vmatpush.msra.mxu0 0.0
    %255 = vmatpush.msra.mxu0 0.0
    %256 = vmatpush.msra.mxu0 0.0
    %257 = vmatpush.msra.mxu0 0.0
    %258 = vmatpush.msra.mxu0 0.0
    %259 = vmatpush.msra.mxu0 0.0
    %260 = vmatpush.msra.mxu0 0.0
    %261 = vmatpush.msra.mxu0 0.0
    %262 = vmatpush.msra.mxu0 0.0
    %263 = vmatpush.msra.mxu0 0.0
    %264 = vmatpush.msra.mxu0 0.0
    %265 = vmatpush.msra.mxu0 0.0
    %266 = vmatpush.msra.mxu0 0.0
    %v267 = vand.u32 %v48, 4294901760
    %v268 = vsub.f32 %v48, %v267
    %269 = vmatpush.msra.mxu0 %v268
    %v270 = vand.u32 %v43, 4294901760
    %v271 = vsub.f32 %v43, %v270
    %272 = vmatmul.f32.gmra.mxu0 %v271
    %v273 = vpop.f32.mrf.mxu0
    %v274 = vadd.f32 %v250, %v273
    %275 = vdwg.mxu0
    %276 = vmatpush.msra.mxu0 0.0
    %277 = vmatpush.msra.mxu0 0.0
    %278 = vmatpush.msra.mxu0 0.0
    %279 = vmatpush.msra.mxu0 0.0
    %280 = vmatpush.msra.mxu0 0.0
    %281 = vmatpush.msra.mxu0 0.0
    %282 = vmatpush.msra.mxu0 0.0
    %283 = vmatpush.msra.mxu0 0.0
    %284 = vmatpush.msra.mxu0 0.0
    %285 = vmatpush.msra.mxu0 0.0
    %286 = vmatpush.msra.mxu0 0.0
    %287 = vmatpush.msra.mxu0 0.0
    %288 = vmatpush.msra.mxu0 0.0
    %289 = vmatpush.msra.mxu0 0.0
    %290 = vmatpush.msra.mxu0 0.0
    %v291 = vand.u32 %v48, 4294901760
    %292 = vmatpush.msra.mxu0 %v291
    %v293 = vand.u32 %v43, 4294901760
    %v294 = vsub.f32 %v43, %v293
    %v295 = vand.u32 %v294, 4294901760
    %296 = vmatmul.f32.gmra.mxu0 %v295
    %v297 = vpop.f32.mrf.mxu0
    %v298 = vadd.f32 %v274, %v297
    %299 = vdwg.mxu0
    %300 = vmatpush.msra.mxu0 0.0
    %301 = vmatpush.msra.mxu0 0.0
    %302 = vmatpush.msra.mxu0 0.0
    %303 = vmatpush.msra.mxu0 0.0
    %304 = vmatpush.msra.mxu0 0.0
    %305 = vmatpush.msra.mxu0 0.0
    %306 = vmatpush.msra.mxu0 0.0
    %307 = vmatpush.msra.mxu0 0.0
    %308 = vmatpush.msra.mxu0 0.0
    %309 = vmatpush.msra.mxu0 0.0
    %310 = vmatpush.msra.mxu0 0.0
    %311 = vmatpush.msra.mxu0 0.0
    %312 = vmatpush.msra.mxu0 0.0
    %313 = vmatpush.msra.mxu0 0.0
    %314 = vmatpush.msra.mxu0 0.0
    %v315 = vand.u32 %v48, 4294901760
    %v316 = vsub.f32 %v48, %v315
    %v317 = vand.u32 %v316, 4294901760
    %318 = vmatpush.msra.mxu0 %v317
    %v319 = vand.u32 %v43, 4294901760
    %320 = vmatmul.f32.gmra.mxu0 %v319
    %v321 = vpop.f32.mrf.mxu0
    %v322 = vadd.f32 %v298, %v321
    %323 = vdwg.mxu0
    %324 = vmatpush.msra.mxu0 0.0
    %325 = vmatpush.msra.mxu0 0.0
    %326 = vmatpush.msra.mxu0 0.0
    %327 = vmatpush.msra.mxu0 0.0
    %328 = vmatpush.msra.mxu0 0.0
    %329 = vmatpush.msra.mxu0 0.0
    %330 = vmatpush.msra.mxu0 0.0
    %331 = vmatpush.msra.mxu0 0.0
    %332 = vmatpush.msra.mxu0 0.0
    %333 = vmatpush.msra.mxu0 0.0
    %334 = vmatpush.msra.mxu0 0.0
    %335 = vmatpush.msra.mxu0 0.0
    %336 = vmatpush.msra.mxu0 0.0
    %337 = vmatpush.msra.mxu0 0.0
    %338 = vmatpush.msra.mxu0 0.0
    %v339 = vand.u32 %v48, 4294901760
    %340 = vmatpush.msra.mxu0 %v339
    %v341 = vand.u32 %v43, 4294901760
    %342 = vmatmul.f32.gmra.mxu0 %v341
    %v343 = vpop.f32.mrf.mxu0
    %v344 = vadd.f32 %v322, %v343
    %345 = vdwg.mxu0
    %346 = vmatpush.msra.mxu0 0.0
    %347 = vmatpush.msra.mxu0 0.0
    %348 = vmatpush.msra.mxu0 0.0
    %349 = vmatpush.msra.mxu0 0.0
    %350 = vmatpush.msra.mxu0 0.0
    %351 = vmatpush.msra.mxu0 0.0
    %352 = vmatpush.msra.mxu0 0.0
    %353 = vmatpush.msra.mxu0 0.0
    %354 = vmatpush.msra.mxu0 0.0
    %355 = vmatpush.msra.mxu0 0.0
    %356 = vmatpush.msra.mxu0 0.0
    %357 = vmatpush.msra.mxu0 0.0
    %358 = vmatpush.msra.mxu0 0.0
    %359 = vmatpush.msra.mxu0 0.0
    %360 = vmatpush.msra.mxu0 0.0
    %v361 = vand.u32 %v50, 4294901760
    %362 = vmatpush.msra.mxu0 %v361
    %v363 = vand.u32 %v43, 4294901760
    %v364 = vsub.f32 %v43, %v363
    %v365 = vand.u32 %v364, 4294901760
    %v366 = vsub.f32 %v364, %v365
    %v367 = vand.u32 %v366, 4294901760
    %368 = vmatmul.f32.gmra.mxu0 %v367
    %v369 = vpop.f32.mrf.mxu0
    %v370 = vadd.f32 0.0, %v369
    %371 = vdwg.mxu0
    %372 = vmatpush.msra.mxu0 0.0
    %373 = vmatpush.msra.mxu0 0.0
    %374 = vmatpush.msra.mxu0 0.0
    %375 = vmatpush.msra.mxu0 0.0
    %376 = vmatpush.msra.mxu0 0.0
    %377 = vmatpush.msra.mxu0 0.0
    %378 = vmatpush.msra.mxu0 0.0
    %379 = vmatpush.msra.mxu0 0.0
    %380 = vmatpush.msra.mxu0 0.0
    %381 = vmatpush.msra.mxu0 0.0
    %382 = vmatpush.msra.mxu0 0.0
    %383 = vmatpush.msra.mxu0 0.0
    %384 = vmatpush.msra.mxu0 0.0
    %385 = vmatpush.msra.mxu0 0.0
    %386 = vmatpush.msra.mxu0 0.0
    %v387 = vand.u32 %v50, 4294901760
    %v388 = vsub.f32 %v50, %v387
    %v389 = vand.u32 %v388, 4294901760
    %v390 = vsub.f32 %v388, %v389
    %v391 = vand.u32 %v390, 4294901760
    %392 = vmatpush.msra.mxu0 %v391
    %v393 = vand.u32 %v43, 4294901760
    %394 = vmatmul.f32.gmra.mxu0 %v393
    %v395 = vpop.f32.mrf.mxu0
    %v396 = vadd.f32 %v370, %v395
    %397 = vdwg.mxu0
    %398 = vmatpush.msra.mxu0 0.0
    %399 = vmatpush.msra.mxu0 0.0
    %400 = vmatpush.msra.mxu0 0.0
    %401 = vmatpush.msra.mxu0 0.0
    %402 = vmatpush.msra.mxu0 0.0
    %403 = vmatpush.msra.mxu0 0.0
    %404 = vmatpush.msra.mxu0 0.0
    %405 = vmatpush.msra.mxu0 0.0
    %406 = vmatpush.msra.mxu0 0.0
    %407 = vmatpush.msra.mxu0 0.0
    %408 = vmatpush.msra.mxu0 0.0
    %409 = vmatpush.msra.mxu0 0.0
    %410 = vmatpush.msra.mxu0 0.0
    %411 = vmatpush.msra.mxu0 0.0
    %412 = vmatpush.msra.mxu0 0.0
    %v413 = vand.u32 %v50, 4294901760
    %v414 = vsub.f32 %v50, %v413
    %415 = vmatpush.msra.mxu0 %v414
    %v416 = vand.u32 %v43, 4294901760
    %v417 = vsub.f32 %v43, %v416
    %418 = vmatmul.f32.gmra.mxu0 %v417
    %v419 = vpop.f32.mrf.mxu0
    %v420 = vadd.f32 %v396, %v419
    %421 = vdwg.mxu0
    %422 = vmatpush.msra.mxu0 0.0
    %423 = vmatpush.msra.mxu0 0.0
    %424 = vmatpush.msra.mxu0 0.0
    %425 = vmatpush.msra.mxu0 0.0
    %426 = vmatpush.msra.mxu0 0.0
    %427 = vmatpush.msra.mxu0 0.0
    %428 = vmatpush.msra.mxu0 0.0
    %429 = vmatpush.msra.mxu0 0.0
    %430 = vmatpush.msra.mxu0 0.0
    %431 = vmatpush.msra.mxu0 0.0
    %432 = vmatpush.msra.mxu0 0.0
    %433 = vmatpush.msra.mxu0 0.0
    %434 = vmatpush.msra.mxu0 0.0
    %435 = vmatpush.msra.mxu0 0.0
    %436 = vmatpush.msra.mxu0 0.0
    %v437 = vand.u32 %v50, 4294901760
    %438 = vmatpush.msra.mxu0 %v437
    %v439 = vand.u32 %v43, 4294901760
    %v440 = vsub.f32 %v43, %v439
    %v441 = vand.u32 %v440, 4294901760
    %442 = vmatmul.f32.gmra.mxu0 %v441
    %v443 = vpop.f32.mrf.mxu0
    %v444 = vadd.f32 %v420, %v443
    %445 = vdwg.mxu0
    %446 = vmatpush.msra.mxu0 0.0
    %447 = vmatpush.msra.mxu0 0.0
    %448 = vmatpush.msra.mxu0 0.0
    %449 = vmatpush.msra.mxu0 0.0
    %450 = vmatpush.msra.mxu0 0.0
    %451 = vmatpush.msra.mxu0 0.0
    %452 = vmatpush.msra.mxu0 0.0
    %453 = vmatpush.msra.mxu0 0.0
    %454 = vmatpush.msra.mxu0 0.0
    %455 = vmatpush.msra.mxu0 0.0
    %456 = vmatpush.msra.mxu0 0.0
    %457 = vmatpush.msra.mxu0 0.0
    %458 = vmatpush.msra.mxu0 0.0
    %459 = vmatpush.msra.mxu0 0.0
    %460 = vmatpush.msra.mxu0 0.0
    %v461 = vand.u32 %v50, 4294901760
    %v462 = vsub.f32 %v50, %v461
    %v463 = vand.u32 %v462, 4294901760
    %464 = vmatpush.msra.mxu0 %v463
    %v465 = vand.u32 %v43, 4294901760
    %466 = vmatmul.f32.gmra.mxu0 %v465
    %v467 = vpop.f32.mrf.mxu0
    %v468 = vadd.f32 %v444, %v467
    %469 = vdwg.mxu0
    %470 = vmatpush.msra.mxu0 0.0
    %471 = vmatpush.msra.mxu0 0.0
    %472 = vmatpush.msra.mxu0 0.0
    %473 = vmatpush.msra.mxu0 0.0
    %474 = vmatpush.msra.mxu0 0.0
    %475 = vmatpush.msra.mxu0 0.0
    %476 = vmatpush.msra.mxu0 0.0
    %477 = vmatpush.msra.mxu0 0.0
    %478 = vmatpush.msra.mxu0 0.0
    %479 = vmatpush.msra.mxu0 0.0
    %480 = vmatpush.msra.mxu0 0.0
    %481 = vmatpush.msra.mxu0 0.0
    %482 = vmatpush.msra.mxu0 0.0
    %483 = vmatpush.msra.mxu0 0.0
    %484 = vmatpush.msra.mxu0 0.0
    %v485 = vand.u32 %v50, 4294901760
    %486 = vmatpush.msra.mxu0 %v485
    %v487 = vand.u32 %v43, 4294901760
    %488 = vmatmul.f32.gmra.mxu0 %v487
    %v489 = vpop.f32.mrf.mxu0
    %v490 = vadd.f32 %v468, %v489
    %491 = vdwg.mxu0
    %492 = vmatpush.msra.mxu0 0.0
    %493 = vmatpush.msra.mxu0 0.0
    %494 = vmatpush.msra.mxu0 0.0
    %495 = vmatpush.msra.mxu0 0.0
    %496 = vmatpush.msra.mxu0 0.0
    %497 = vmatpush.msra.mxu0 0.0
    %498 = vmatpush.msra.mxu0 0.0
    %499 = vmatpush.msra.mxu0 0.0
    %500 = vmatpush.msra.mxu0 0.0
    %501 = vmatpush.msra.mxu0 0.0
    %502 = vmatpush.msra.mxu0 0.0
    %503 = vmatpush.msra.mxu0 0.0
    %504 = vmatpush.msra.mxu0 0.0
    %505 = vmatpush.msra.mxu0 0.0
    %506 = vmatpush.msra.mxu0 0.0
    %v507 = vand.u32 %v52, 4294901760
    %508 = vmatpush.msra.mxu0 %v507
    %v509 = vand.u32 %v43, 4294901760
    %v510 = vsub.f32 %v43, %v509
    %v511 = vand.u32 %v510, 4294901760
    %v512 = vsub.f32 %v510, %v511
    %v513 = vand.u32 %v512, 4294901760
    %514 = vmatmul.f32.gmra.mxu0 %v513
    %v515 = vpop.f32.mrf.mxu0
    %v516 = vadd.f32 0.0, %v515
    %517 = vdwg.mxu0
    %518 = vmatpush.msra.mxu0 0.0
    %519 = vmatpush.msra.mxu0 0.0
    %520 = vmatpush.msra.mxu0 0.0
    %521 = vmatpush.msra.mxu0 0.0
    %522 = vmatpush.msra.mxu0 0.0
    %523 = vmatpush.msra.mxu0 0.0
    %524 = vmatpush.msra.mxu0 0.0
    %525 = vmatpush.msra.mxu0 0.0
    %526 = vmatpush.msra.mxu0 0.0
    %527 = vmatpush.msra.mxu0 0.0
    %528 = vmatpush.msra.mxu0 0.0
    %529 = vmatpush.msra.mxu0 0.0
    %530 = vmatpush.msra.mxu0 0.0
    %531 = vmatpush.msra.mxu0 0.0
    %532 = vmatpush.msra.mxu0 0.0
    %v533 = vand.u32 %v52, 4294901760
    %v534 = vsub.f32 %v52, %v533
    %v535 = vand.u32 %v534, 4294901760
    %v536 = vsub.f32 %v534, %v535
    %v537 = vand.u32 %v536, 4294901760
    %538 = vmatpush.msra.mxu0 %v537
    %v539 = vand.u32 %v43, 4294901760
    %540 = vmatmul.f32.gmra.mxu0 %v539
    %v541 = vpop.f32.mrf.mxu0
    %v542 = vadd.f32 %v516, %v541
    %543 = vdwg.mxu0
    %544 = vmatpush.msra.mxu0 0.0
    %545 = vmatpush.msra.mxu0 0.0
    %546 = vmatpush.msra.mxu0 0.0
    %547 = vmatpush.msra.mxu0 0.0
    %548 = vmatpush.msra.mxu0 0.0
    %549 = vmatpush.msra.mxu0 0.0
    %550 = vmatpush.msra.mxu0 0.0
    %551 = vmatpush.msra.mxu0 0.0
    %552 = vmatpush.msra.mxu0 0.0
    %553 = vmatpush.msra.mxu0 0.0
    %554 = vmatpush.msra.mxu0 0.0
    %555 = vmatpush.msra.mxu0 0.0
    %556 = vmatpush.msra.mxu0 0.0
    %557 = vmatpush.msra.mxu0 0.0
    %558 = vmatpush.msra.mxu0 0.0
    %v559 = vand.u32 %v52, 4294901760
    %v560 = vsub.f32 %v52, %v559
    %561 = vmatpush.msra.mxu0 %v560
    %v562 = vand.u32 %v43, 4294901760
    %v563 = vsub.f32 %v43, %v562
    %564 = vmatmul.f32.gmra.mxu0 %v563
    %v565 = vpop.f32.mrf.mxu0
    %v566 = vadd.f32 %v542, %v565
    %567 = vdwg.mxu0
    %568 = vmatpush.msra.mxu0 0.0
    %569 = vmatpush.msra.mxu0 0.0
    %570 = vmatpush.msra.mxu0 0.0
    %571 = vmatpush.msra.mxu0 0.0
    %572 = vmatpush.msra.mxu0 0.0
    %573 = vmatpush.msra.mxu0 0.0
    %574 = vmatpush.msra.mxu0 0.0
    %575 = vmatpush.msra.mxu0 0.0
    %576 = vmatpush.msra.mxu0 0.0
    %577 = vmatpush.msra.mxu0 0.0
    %578 = vmatpush.msra.mxu0 0.0
    %579 = vmatpush.msra.mxu0 0.0
    %580 = vmatpush.msra.mxu0 0.0
    %581 = vmatpush.msra.mxu0 0.0
    %582 = vmatpush.msra.mxu0 0.0
    %v583 = vand.u32 %v52, 4294901760
    %584 = vmatpush.msra.mxu0 %v583
    %v585 = vand.u32 %v43, 4294901760
    %v586 = vsub.f32 %v43, %v585
    %v587 = vand.u32 %v586, 4294901760
    %588 = vmatmul.f32.gmra.mxu0 %v587
    %v589 = vpop.f32.mrf.mxu0
    %v590 = vadd.f32 %v566, %v589
    %591 = vdwg.mxu0
    %592 = vmatpush.msra.mxu0 0.0
    %593 = vmatpush.msra.mxu0 0.0
    %594 = vmatpush.msra.mxu0 0.0
    %595 = vmatpush.msra.mxu0 0.0
    %596 = vmatpush.msra.mxu0 0.0
    %597 = vmatpush.msra.mxu0 0.0
    %598 = vmatpush.msra.mxu0 0.0
    %599 = vmatpush.msra.mxu0 0.0
    %600 = vmatpush.msra.mxu0 0.0
    %601 = vmatpush.msra.mxu0 0.0
    %602 = vmatpush.msra.mxu0 0.0
    %603 = vmatpush.msra.mxu0 0.0
    %604 = vmatpush.msra.mxu0 0.0
    %605 = vmatpush.msra.mxu0 0.0
    %606 = vmatpush.msra.mxu0 0.0
    %v607 = vand.u32 %v52, 4294901760
    %v608 = vsub.f32 %v52, %v607
    %v609 = vand.u32 %v608, 4294901760
    %610 = vmatpush.msra.mxu0 %v609
    %v611 = vand.u32 %v43, 4294901760
    %612 = vmatmul.f32.gmra.mxu0 %v611
    %v613 = vpop.f32.mrf.mxu0
    %v614 = vadd.f32 %v590, %v613
    %615 = vdwg.mxu0
    %616 = vmatpush.msra.mxu0 0.0
    %617 = vmatpush.msra.mxu0 0.0
    %618 = vmatpush.msra.mxu0 0.0
    %619 = vmatpush.msra.mxu0 0.0
    %620 = vmatpush.msra.mxu0 0.0
    %621 = vmatpush.msra.mxu0 0.0
    %622 = vmatpush.msra.mxu0 0.0
    %623 = vmatpush.msra.mxu0 0.0
    %624 = vmatpush.msra.mxu0 0.0
    %625 = vmatpush.msra.mxu0 0.0
    %626 = vmatpush.msra.mxu0 0.0
    %627 = vmatpush.msra.mxu0 0.0
    %628 = vmatpush.msra.mxu0 0.0
    %629 = vmatpush.msra.mxu0 0.0
    %630 = vmatpush.msra.mxu0 0.0
    %v631 = vand.u32 %v52, 4294901760
    %632 = vmatpush.msra.mxu0 %v631
    %v633 = vand.u32 %v43, 4294901760
    %634 = vmatmul.f32.gmra.mxu0 %v633
    %v635 = vpop.f32.mrf.mxu0
    %v636 = vadd.f32 %v614, %v635
    %637 = vdwg.mxu0
    %v638 = vld [vmem:[%s2] sm:$0xf]
    %v640 = vperm.slane %v638, 0
    %v641 = vperm.slane %v638, 1
    %v642 = vperm.slane %v638, 2
    %v643 = vperm.slane %v638, 3
    %v648 = vsub.f32 %v198, %v640
    %v649 = vsub.f32 %v344, %v641
    %v650 = vsub.f32 %v490, %v642
    %v651 = vsub.f32 %v636, %v643
    %v652 = vand.u32 2147483647, %v648
    %vm653 = vcmp.le.f32.partialorder %v652, 0.7853982
    %vm654 = vcmp.lt.s32.totalorder %v648, 0
    %v655 = vand.u32 %v648, 2139095040
    %v656 = vshrl.u32 %v655, 23
    %v657 = vsub.s32 %v656, 127
    %v658 = vand.u32 2147483647, %v648
    %v659 = vand.u32 %v658, 8388607
    %v660 = vor.u32 %v659, 8388608
    %v661 = vsub.s32 0, %v660
    %v662 = vadd.s32 %v657, 1
    %vm663 = vcmp.gt.s32.totalorder %v662, 0
    %v664 = vsel %vm663, %v662, 0
    %v665 = vshrl.u32 %v664, 5
    %v666 = vand.u32 %v664, 31
    %v667 = vsub.s32 32, %v666
    %v668 = vshrl.u32 683565275, %v667
    %v669 = vshll.u32 683565275, %v666
    %v670 = vshrl.u32 2475754826, %v667
    %v671 = vor.u32 %v669, %v670
    %v672 = vshll.u32 2475754826, %v666
    %v673 = vshrl.u32 2131351028, %v667
    %v674 = vor.u32 %v672, %v673
    %v675 = vshll.u32 2131351028, %v666
    %v676 = vshrl.u32 2102212464, %v667
    %v677 = vor.u32 %v675, %v676
    %v678 = vshll.u32 2102212464, %v666
    %v679 = vshrl.u32 920167782, %v667
    %v680 = vor.u32 %v678, %v679
    %v681 = vshll.u32 920167782, %v666
    %v682 = vshrl.u32 1326507024, %v667
    %v683 = vor.u32 %v681, %v682
    %vm684 = vcmp.lt.s32.totalorder %v665, 1
    %vm685 = vcmp.lt.s32.totalorder %v665, 2
    %vm686 = vcmp.lt.s32.totalorder %v665, 3
    %vm687 = vcmp.lt.s32.totalorder %v665, 4
    %v688 = vsel %vm684, %v668, %v671
    %v689 = vsel %vm687, %v677, 2102212464
    %v690 = vsel %vm686, %v674, %v689
    %v691 = vsel %vm685, %v688, %v690
    %v692 = vsel %vm684, %v671, %v674
    %v693 = vsel %vm687, %v680, 920167782
    %v694 = vsel %vm686, %v677, %v693
    %v695 = vsel %vm685, %v692, %v694
    %v696 = vsel %vm684, %v674, %v677
    %v697 = vsel %vm687, %v683, 1326507024
    %v698 = vsel %vm686, %v680, %v697
    %v699 = vsel %vm685, %v696, %v698
    %v700 = vshll.u32 %v660, 8
    %v701 = vand.u32 %v700, 65535
    %v702 = vshrl.u32 %v700, 16
    %v703 = vand.u32 %v699, 65535
    %v704 = vshrl.u32 %v699, 16
    %v705 = vmul.u32 %v701, %v703
    %v706 = vmul.u32 %v701, %v704
    %v707 = vmul.u32 %v702, %v703
    %v708 = vmul.u32 %v702, %v704
    %v709 = vshll.u32 %v706, 16
    %v710 = vshrl.u32 %v706, 16
    %v711 = vshll.u32 %v707, 16
    %v712 = vshrl.u32 %v707, 16
    %vm713 = vc.u32 %v705, %v709
    %v714 = vsel %vm713, 1, 0
    %v715 = vadd.s32 %v705, %v709
    %v716 = vadd.s32 %v708, %v714
    %vm717 = vc.u32 %v715, %v711
    %v718 = vsel %vm717, 1, 0
    %v719 = vadd.s32 %v715, %v711
    %v720 = vadd.s32 %v716, %v718
    %v721 = vadd.s32 %v720, %v710
    %v722 = vadd.s32 %v721, %v712
    %v723 = vand.u32 %v700, 65535
    %v724 = vshrl.u32 %v700, 16
    %v725 = vand.u32 %v695, 65535
    %v726 = vshrl.u32 %v695, 16
    %v727 = vmul.u32 %v723, %v725
    %v728 = vmul.u32 %v723, %v726
    %v729 = vmul.u32 %v724, %v725
    %v730 = vmul.u32 %v724, %v726
    %v731 = vshll.u32 %v728, 16
    %v732 = vshrl.u32 %v728, 16
    %v733 = vshll.u32 %v729, 16
    %v734 = vshrl.u32 %v729, 16
    %vm735 = vc.u32 %v727, %v731
    %v736 = vsel %vm735, 1, 0
    %v737 = vadd.s32 %v727, %v731
    %v738 = vadd.s32 %v730, %v736
    %vm739 = vc.u32 %v737, %v733
    %v740 = vsel %vm739, 1, 0
    %v741 = vadd.s32 %v737, %v733
    %v742 = vadd.s32 %v738, %v740
    %v743 = vadd.s32 %v742, %v732
    %v744 = vadd.s32 %v743, %v734
    %v745 = vmul.u32 %v700, %v691
    %v746 = vadd.s32 %v722, %v741
    %vm747 = vc.u32 %v722, %v741
    %v748 = vadd.s32 %v744, 1
    %v749 = vsel %vm747, %v748, %v744
    %v750 = vadd.s32 %v745, %v749
    %v751 = vadd.s32 %v750, 536870912
    %v752 = vshrl.u32 %v751, 30
    %v753 = vshll.u32 %v752, 30
    %v754 = vsub.s32 %v750, %v753
    %vm755 = vcmp.lt.s32.totalorder %v754, 0
    %v756 = vsub.s32 0, %v754
    %v757 = vsel %vm755, %v756, %v754
    %v758 = vclz %v757
    %v759 = vsub.s32 %v758, 2
    %vm760 = vcmp.gt.s32.totalorder 0, %v759
    %v761 = vsel %vm760, 0, %v759
    %v762 = vsub.s32 32, %v761
    %v763 = vshll.u32 %v754, %v761
    %v764 = vshrl.u32 %v746, %v762
    %v765 = vor.u32 %v763, %v764
    %v766 = vsub.s32 4294967266, %v761
    %v767 = vadd.s32 %v766, 127
    %v768 = vshll.u32 %v767, 23
    %v769 = vor.u32 4788187, %v768
    %v770 = vand.u32 2147483647, %v769
    %v772 = vcvt.s32.f32 %v765
    %v773 = vmul.f32 %v772, %v770
    %v774 = vxor.u32 %v773, 2147483648
    %v775 = vsel %vm654, %v774, %v773
    %v776 = vsub.s32 4, %v752
    %v777 = vsel %vm654, %v776, %v752
    %v778 = vsel %vm653, %v648, %v775
    %v779 = vsel %vm653, 0, %v777
    %v780 = vmul.f32 %v778, %v778
    %v781 = vmul.f32 %v780, -0.001358992
    %v782 = vadd.f32 %v781, 0.041655596
    %v783 = vmul.f32 %v780, %v782
    %v784 = vadd.f32 %v783, -0.4999988
    %v785 = vmul.f32 %v780, %v784
    %v786 = vadd.f32 1.0, %v785
    %v787 = vmul.f32 %v778, %v778
    %v788 = vmul.f32 %v787, -0.00019511016
    %v789 = vadd.f32 %v788, 0.008332121
    %v790 = vmul.f32 %v787, %v789
    %v791 = vadd.f32 %v790, -0.16666654
    %v792 = vmul.f32 %v787, %v791
    %v793 = vadd.f32 %v792, 1.0
    %v794 = vmul.f32 %v793, %v778
    %vm795 = vweird.f32 %v648
    %v796 = vand.u32 %v779, 3
    %vm797 = vcmp.lt.s32.totalorder %v796, 2
    %vm798 = vcmp.eq.s32.totalorder %v796, 0
    %v799 = vxor.u32 %v794, 2147483648
    %v800 = vsel %vm798, %v786, %v799
    %vm801 = vcmp.eq.s32.totalorder %v796, 2
    %v802 = vxor.u32 %v786, 2147483648
    %v803 = vsel %vm801, %v802, %v794
    %v804 = vsel %vm797, %v800, %v803
    %v805 = vsel %vm795, nan, %v804
    %v806 = vand.u32 2147483647, %v649
    %vm807 = vcmp.le.f32.partialorder %v806, 0.7853982
    %vm808 = vcmp.lt.s32.totalorder %v649, 0
    %v809 = vand.u32 %v649, 2139095040
    %v810 = vshrl.u32 %v809, 23
    %v811 = vsub.s32 %v810, 127
    %v812 = vand.u32 2147483647, %v649
    %v813 = vand.u32 %v812, 8388607
    %v814 = vor.u32 %v813, 8388608
    %v815 = vsub.s32 0, %v814
    %v816 = vadd.s32 %v811, 1
    %vm817 = vcmp.gt.s32.totalorder %v816, 0
    %v818 = vsel %vm817, %v816, 0
    %v819 = vshrl.u32 %v818, 5
    %v820 = vand.u32 %v818, 31
    %v821 = vsub.s32 32, %v820
    %v822 = vshrl.u32 683565275, %v821
    %v823 = vshll.u32 683565275, %v820
    %v824 = vshrl.u32 2475754826, %v821
    %v825 = vor.u32 %v823, %v824
    %v826 = vshll.u32 2475754826, %v820
    %v827 = vshrl.u32 2131351028, %v821
    %v828 = vor.u32 %v826, %v827
    %v829 = vshll.u32 2131351028, %v820
    %v830 = vshrl.u32 2102212464, %v821
    %v831 = vor.u32 %v829, %v830
    %v832 = vshll.u32 2102212464, %v820
    %v833 = vshrl.u32 920167782, %v821
    %v834 = vor.u32 %v832, %v833
    %v835 = vshll.u32 920167782, %v820
    %v836 = vshrl.u32 1326507024, %v821
    %v837 = vor.u32 %v835, %v836
    %vm838 = vcmp.lt.s32.totalorder %v819, 1
    %vm839 = vcmp.lt.s32.totalorder %v819, 2
    %vm840 = vcmp.lt.s32.totalorder %v819, 3
    %vm841 = vcmp.lt.s32.totalorder %v819, 4
    %v842 = vsel %vm838, %v822, %v825
    %v843 = vsel %vm841, %v831, 2102212464
    %v844 = vsel %vm840, %v828, %v843
    %v845 = vsel %vm839, %v842, %v844
    %v846 = vsel %vm838, %v825, %v828
    %v847 = vsel %vm841, %v834, 920167782
    %v848 = vsel %vm840, %v831, %v847
    %v849 = vsel %vm839, %v846, %v848
    %v850 = vsel %vm838, %v828, %v831
    %v851 = vsel %vm841, %v837, 1326507024
    %v852 = vsel %vm840, %v834, %v851
    %v853 = vsel %vm839, %v850, %v852
    %v854 = vshll.u32 %v814, 8
    %v855 = vand.u32 %v854, 65535
    %v856 = vshrl.u32 %v854, 16
    %v857 = vand.u32 %v853, 65535
    %v858 = vshrl.u32 %v853, 16
    %v859 = vmul.u32 %v855, %v857
    %v860 = vmul.u32 %v855, %v858
    %v861 = vmul.u32 %v856, %v857
    %v862 = vmul.u32 %v856, %v858
    %v863 = vshll.u32 %v860, 16
    %v864 = vshrl.u32 %v860, 16
    %v865 = vshll.u32 %v861, 16
    %v866 = vshrl.u32 %v861, 16
    %vm867 = vc.u32 %v859, %v863
    %v868 = vsel %vm867, 1, 0
    %v869 = vadd.s32 %v859, %v863
    %v870 = vadd.s32 %v862, %v868
    %vm871 = vc.u32 %v869, %v865
    %v872 = vsel %vm871, 1, 0
    %v873 = vadd.s32 %v869, %v865
    %v874 = vadd.s32 %v870, %v872
    %v875 = vadd.s32 %v874, %v864
    %v876 = vadd.s32 %v875, %v866
    %v877 = vand.u32 %v854, 65535
    %v878 = vshrl.u32 %v854, 16
    %v879 = vand.u32 %v849, 65535
    %v880 = vshrl.u32 %v849, 16
    %v881 = vmul.u32 %v877, %v879
    %v882 = vmul.u32 %v877, %v880
    %v883 = vmul.u32 %v878, %v879
    %v884 = vmul.u32 %v878, %v880
    %v885 = vshll.u32 %v882, 16
    %v886 = vshrl.u32 %v882, 16
    %v887 = vshll.u32 %v883, 16
    %v888 = vshrl.u32 %v883, 16
    %vm889 = vc.u32 %v881, %v885
    %v890 = vsel %vm889, 1, 0
    %v891 = vadd.s32 %v881, %v885
    %v892 = vadd.s32 %v884, %v890
    %vm893 = vc.u32 %v891, %v887
    %v894 = vsel %vm893, 1, 0
    %v895 = vadd.s32 %v891, %v887
    %v896 = vadd.s32 %v892, %v894
    %v897 = vadd.s32 %v896, %v886
    %v898 = vadd.s32 %v897, %v888
    %v899 = vmul.u32 %v854, %v845
    %v900 = vadd.s32 %v876, %v895
    %vm901 = vc.u32 %v876, %v895
    %v902 = vadd.s32 %v898, 1
    %v903 = vsel %vm901, %v902, %v898
    %v904 = vadd.s32 %v899, %v903
    %v905 = vadd.s32 %v904, 536870912
    %v906 = vshrl.u32 %v905, 30
    %v907 = vshll.u32 %v906, 30
    %v908 = vsub.s32 %v904, %v907
    %vm909 = vcmp.lt.s32.totalorder %v908, 0
    %v910 = vsub.s32 0, %v908
    %v911 = vsel %vm909, %v910, %v908
    %v912 = vclz %v911
    %v913 = vsub.s32 %v912, 2
    %vm914 = vcmp.gt.s32.totalorder 0, %v913
    %v915 = vsel %vm914, 0, %v913
    %v916 = vsub.s32 32, %v915
    %v917 = vshll.u32 %v908, %v915
    %v918 = vshrl.u32 %v900, %v916
    %v919 = vor.u32 %v917, %v918
    %v920 = vsub.s32 4294967266, %v915
    %v921 = vadd.s32 %v920, 127
    %v922 = vshll.u32 %v921, 23
    %v923 = vor.u32 4788187, %v922
    %v924 = vand.u32 2147483647, %v923
    %v926 = vcvt.s32.f32 %v919
    %v927 = vmul.f32 %v926, %v924
    %v928 = vxor.u32 %v927, 2147483648
    %v929 = vsel %vm808, %v928, %v927
    %v930 = vsub.s32 4, %v906
    %v931 = vsel %vm808, %v930, %v906
    %v932 = vsel %vm807, %v649, %v929
    %v933 = vsel %vm807, 0, %v931
    %v934 = vmul.f32 %v932, %v932
    %v935 = vmul.f32 %v934, -0.001358992
    %v936 = vadd.f32 %v935, 0.041655596
    %v937 = vmul.f32 %v934, %v936
    %v938 = vadd.f32 %v937, -0.4999988
    %v939 = vmul.f32 %v934, %v938
    %v940 = vadd.f32 1.0, %v939
    %v941 = vmul.f32 %v932, %v932
    %v942 = vmul.f32 %v941, -0.00019511016
    %v943 = vadd.f32 %v942, 0.008332121
    %v944 = vmul.f32 %v941, %v943
    %v945 = vadd.f32 %v944, -0.16666654
    %v946 = vmul.f32 %v941, %v945
    %v947 = vadd.f32 %v946, 1.0
    %v948 = vmul.f32 %v947, %v932
    %vm949 = vweird.f32 %v649
    %v950 = vand.u32 %v933, 3
    %vm951 = vcmp.lt.s32.totalorder %v950, 2
    %vm952 = vcmp.eq.s32.totalorder %v950, 0
    %v953 = vxor.u32 %v948, 2147483648
    %v954 = vsel %vm952, %v940, %v953
    %vm955 = vcmp.eq.s32.totalorder %v950, 2
    %v956 = vxor.u32 %v940, 2147483648
    %v957 = vsel %vm955, %v956, %v948
    %v958 = vsel %vm951, %v954, %v957
    %v959 = vsel %vm949, nan, %v958
    %v960 = vand.u32 2147483647, %v650
    %vm961 = vcmp.le.f32.partialorder %v960, 0.7853982
    %vm962 = vcmp.lt.s32.totalorder %v650, 0
    %v963 = vand.u32 %v650, 2139095040
    %v964 = vshrl.u32 %v963, 23
    %v965 = vsub.s32 %v964, 127
    %v966 = vand.u32 2147483647, %v650
    %v967 = vand.u32 %v966, 8388607
    %v968 = vor.u32 %v967, 8388608
    %v969 = vsub.s32 0, %v968
    %v970 = vadd.s32 %v965, 1
    %vm971 = vcmp.gt.s32.totalorder %v970, 0
    %v972 = vsel %vm971, %v970, 0
    %v973 = vshrl.u32 %v972, 5
    %v974 = vand.u32 %v972, 31
    %v975 = vsub.s32 32, %v974
    %v976 = vshrl.u32 683565275, %v975
    %v977 = vshll.u32 683565275, %v974
    %v978 = vshrl.u32 2475754826, %v975
    %v979 = vor.u32 %v977, %v978
    %v980 = vshll.u32 2475754826, %v974
    %v981 = vshrl.u32 2131351028, %v975
    %v982 = vor.u32 %v980, %v981
    %v983 = vshll.u32 2131351028, %v974
    %v984 = vshrl.u32 2102212464, %v975
    %v985 = vor.u32 %v983, %v984
    %v986 = vshll.u32 2102212464, %v974
    %v987 = vshrl.u32 920167782, %v975
    %v988 = vor.u32 %v986, %v987
    %v989 = vshll.u32 920167782, %v974
    %v990 = vshrl.u32 1326507024, %v975
    %v991 = vor.u32 %v989, %v990
    %vm992 = vcmp.lt.s32.totalorder %v973, 1
    %vm993 = vcmp.lt.s32.totalorder %v973, 2
    %vm994 = vcmp.lt.s32.totalorder %v973, 3
    %vm995 = vcmp.lt.s32.totalorder %v973, 4
    %v996 = vsel %vm992, %v976, %v979
    %v997 = vsel %vm995, %v985, 2102212464
    %v998 = vsel %vm994, %v982, %v997
    %v999 = vsel %vm993, %v996, %v998
    %v1000 = vsel %vm992, %v979, %v982
    %v1001 = vsel %vm995, %v988, 920167782
    %v1002 = vsel %vm994, %v985, %v1001
    %v1003 = vsel %vm993, %v1000, %v1002
    %v1004 = vsel %vm992, %v982, %v985
    %v1005 = vsel %vm995, %v991, 1326507024
    %v1006 = vsel %vm994, %v988, %v1005
    %v1007 = vsel %vm993, %v1004, %v1006
    %v1008 = vshll.u32 %v968, 8
    %v1009 = vand.u32 %v1008, 65535
    %v1010 = vshrl.u32 %v1008, 16
    %v1011 = vand.u32 %v1007, 65535
    %v1012 = vshrl.u32 %v1007, 16
    %v1013 = vmul.u32 %v1009, %v1011
    %v1014 = vmul.u32 %v1009, %v1012
    %v1015 = vmul.u32 %v1010, %v1011
    %v1016 = vmul.u32 %v1010, %v1012
    %v1017 = vshll.u32 %v1014, 16
    %v1018 = vshrl.u32 %v1014, 16
    %v1019 = vshll.u32 %v1015, 16
    %v1020 = vshrl.u32 %v1015, 16
    %vm1021 = vc.u32 %v1013, %v1017
    %v1022 = vsel %vm1021, 1, 0
    %v1023 = vadd.s32 %v1013, %v1017
    %v1024 = vadd.s32 %v1016, %v1022
    %vm1025 = vc.u32 %v1023, %v1019
    %v1026 = vsel %vm1025, 1, 0
    %v1027 = vadd.s32 %v1023, %v1019
    %v1028 = vadd.s32 %v1024, %v1026
    %v1029 = vadd.s32 %v1028, %v1018
    %v1030 = vadd.s32 %v1029, %v1020
    %v1031 = vand.u32 %v1008, 65535
    %v1032 = vshrl.u32 %v1008, 16
    %v1033 = vand.u32 %v1003, 65535
    %v1034 = vshrl.u32 %v1003, 16
    %v1035 = vmul.u32 %v1031, %v1033
    %v1036 = vmul.u32 %v1031, %v1034
    %v1037 = vmul.u32 %v1032, %v1033
    %v1038 = vmul.u32 %v1032, %v1034
    %v1039 = vshll.u32 %v1036, 16
    %v1040 = vshrl.u32 %v1036, 16
    %v1041 = vshll.u32 %v1037, 16
    %v1042 = vshrl.u32 %v1037, 16
    %vm1043 = vc.u32 %v1035, %v1039
    %v1044 = vsel %vm1043, 1, 0
    %v1045 = vadd.s32 %v1035, %v1039
    %v1046 = vadd.s32 %v1038, %v1044
    %vm1047 = vc.u32 %v1045, %v1041
    %v1048 = vsel %vm1047, 1, 0
    %v1049 = vadd.s32 %v1045, %v1041
    %v1050 = vadd.s32 %v1046, %v1048
    %v1051 = vadd.s32 %v1050, %v1040
    %v1052 = vadd.s32 %v1051, %v1042
    %v1053 = vmul.u32 %v1008, %v999
    %v1054 = vadd.s32 %v1030, %v1049
    %vm1055 = vc.u32 %v1030, %v1049
    %v1056 = vadd.s32 %v1052, 1
    %v1057 = vsel %vm1055, %v1056, %v1052
    %v1058 = vadd.s32 %v1053, %v1057
    %v1059 = vadd.s32 %v1058, 536870912
    %v1060 = vshrl.u32 %v1059, 30
    %v1061 = vshll.u32 %v1060, 30
    %v1062 = vsub.s32 %v1058, %v1061
    %vm1063 = vcmp.lt.s32.totalorder %v1062, 0
    %v1064 = vsub.s32 0, %v1062
    %v1065 = vsel %vm1063, %v1064, %v1062
    %v1066 = vclz %v1065
    %v1067 = vsub.s32 %v1066, 2
    %vm1068 = vcmp.gt.s32.totalorder 0, %v1067
    %v1069 = vsel %vm1068, 0, %v1067
    %v1070 = vsub.s32 32, %v1069
    %v1071 = vshll.u32 %v1062, %v1069
    %v1072 = vshrl.u32 %v1054, %v1070
    %v1073 = vor.u32 %v1071, %v1072
    %v1074 = vsub.s32 4294967266, %v1069
    %v1075 = vadd.s32 %v1074, 127
    %v1076 = vshll.u32 %v1075, 23
    %v1077 = vor.u32 4788187, %v1076
    %v1078 = vand.u32 2147483647, %v1077
    %v1080 = vcvt.s32.f32 %v1073
    %v1081 = vmul.f32 %v1080, %v1078
    %v1082 = vxor.u32 %v1081, 2147483648
    %v1083 = vsel %vm962, %v1082, %v1081
    %v1084 = vsub.s32 4, %v1060
    %v1085 = vsel %vm962, %v1084, %v1060
    %v1086 = vsel %vm961, %v650, %v1083
    %v1087 = vsel %vm961, 0, %v1085
    %v1088 = vmul.f32 %v1086, %v1086
    %v1089 = vmul.f32 %v1088, -0.001358992
    %v1090 = vadd.f32 %v1089, 0.041655596
    %v1091 = vmul.f32 %v1088, %v1090
    %v1092 = vadd.f32 %v1091, -0.4999988
    %v1093 = vmul.f32 %v1088, %v1092
    %v1094 = vadd.f32 1.0, %v1093
    %v1095 = vmul.f32 %v1086, %v1086
    %v1096 = vmul.f32 %v1095, -0.00019511016
    %v1097 = vadd.f32 %v1096, 0.008332121
    %v1098 = vmul.f32 %v1095, %v1097
    %v1099 = vadd.f32 %v1098, -0.16666654
    %v1100 = vmul.f32 %v1095, %v1099
    %v1101 = vadd.f32 %v1100, 1.0
    %v1102 = vmul.f32 %v1101, %v1086
    %vm1103 = vweird.f32 %v650
    %v1104 = vand.u32 %v1087, 3
    %vm1105 = vcmp.lt.s32.totalorder %v1104, 2
    %vm1106 = vcmp.eq.s32.totalorder %v1104, 0
    %v1107 = vxor.u32 %v1102, 2147483648
    %v1108 = vsel %vm1106, %v1094, %v1107
    %vm1109 = vcmp.eq.s32.totalorder %v1104, 2
    %v1110 = vxor.u32 %v1094, 2147483648
    %v1111 = vsel %vm1109, %v1110, %v1102
    %v1112 = vsel %vm1105, %v1108, %v1111
    %v1113 = vsel %vm1103, nan, %v1112
    %v1114 = vand.u32 2147483647, %v651
    %vm1115 = vcmp.le.f32.partialorder %v1114, 0.7853982
    %vm1116 = vcmp.lt.s32.totalorder %v651, 0
    %v1117 = vand.u32 %v651, 2139095040
    %v1118 = vshrl.u32 %v1117, 23
    %v1119 = vsub.s32 %v1118, 127
    %v1120 = vand.u32 2147483647, %v651
    %v1121 = vand.u32 %v1120, 8388607
    %v1122 = vor.u32 %v1121, 8388608
    %v1123 = vsub.s32 0, %v1122
    %v1124 = vadd.s32 %v1119, 1
    %vm1125 = vcmp.gt.s32.totalorder %v1124, 0
    %v1126 = vsel %vm1125, %v1124, 0
    %v1127 = vshrl.u32 %v1126, 5
    %v1128 = vand.u32 %v1126, 31
    %v1129 = vsub.s32 32, %v1128
    %v1130 = vshrl.u32 683565275, %v1129
    %v1131 = vshll.u32 683565275, %v1128
    %v1132 = vshrl.u32 2475754826, %v1129
    %v1133 = vor.u32 %v1131, %v1132
    %v1134 = vshll.u32 2475754826, %v1128
    %v1135 = vshrl.u32 2131351028, %v1129
    %v1136 = vor.u32 %v1134, %v1135
    %v1137 = vshll.u32 2131351028, %v1128
    %v1138 = vshrl.u32 2102212464, %v1129
    %v1139 = vor.u32 %v1137, %v1138
    %v1140 = vshll.u32 2102212464, %v1128
    %v1141 = vshrl.u32 920167782, %v1129
    %v1142 = vor.u32 %v1140, %v1141
    %v1143 = vshll.u32 920167782, %v1128
    %v1144 = vshrl.u32 1326507024, %v1129
    %v1145 = vor.u32 %v1143, %v1144
    %vm1146 = vcmp.lt.s32.totalorder %v1127, 1
    %vm1147 = vcmp.lt.s32.totalorder %v1127, 2
    %vm1148 = vcmp.lt.s32.totalorder %v1127, 3
    %vm1149 = vcmp.lt.s32.totalorder %v1127, 4
    %v1150 = vsel %vm1146, %v1130, %v1133
    %v1151 = vsel %vm1149, %v1139, 2102212464
    %v1152 = vsel %vm1148, %v1136, %v1151
    %v1153 = vsel %vm1147, %v1150, %v1152
    %v1154 = vsel %vm1146, %v1133, %v1136
    %v1155 = vsel %vm1149, %v1142, 920167782
    %v1156 = vsel %vm1148, %v1139, %v1155
    %v1157 = vsel %vm1147, %v1154, %v1156
    %v1158 = vsel %vm1146, %v1136, %v1139
    %v1159 = vsel %vm1149, %v1145, 1326507024
    %v1160 = vsel %vm1148, %v1142, %v1159
    %v1161 = vsel %vm1147, %v1158, %v1160
    %v1162 = vshll.u32 %v1122, 8
    %v1163 = vand.u32 %v1162, 65535
    %v1164 = vshrl.u32 %v1162, 16
    %v1165 = vand.u32 %v1161, 65535
    %v1166 = vshrl.u32 %v1161, 16
    %v1167 = vmul.u32 %v1163, %v1165
    %v1168 = vmul.u32 %v1163, %v1166
    %v1169 = vmul.u32 %v1164, %v1165
    %v1170 = vmul.u32 %v1164, %v1166
    %v1171 = vshll.u32 %v1168, 16
    %v1172 = vshrl.u32 %v1168, 16
    %v1173 = vshll.u32 %v1169, 16
    %v1174 = vshrl.u32 %v1169, 16
    %vm1175 = vc.u32 %v1167, %v1171
    %v1176 = vsel %vm1175, 1, 0
    %v1177 = vadd.s32 %v1167, %v1171
    %v1178 = vadd.s32 %v1170, %v1176
    %vm1179 = vc.u32 %v1177, %v1173
    %v1180 = vsel %vm1179, 1, 0
    %v1181 = vadd.s32 %v1177, %v1173
    %v1182 = vadd.s32 %v1178, %v1180
    %v1183 = vadd.s32 %v1182, %v1172
    %v1184 = vadd.s32 %v1183, %v1174
    %v1185 = vand.u32 %v1162, 65535
    %v1186 = vshrl.u32 %v1162, 16
    %v1187 = vand.u32 %v1157, 65535
    %v1188 = vshrl.u32 %v1157, 16
    %v1189 = vmul.u32 %v1185, %v1187
    %v1190 = vmul.u32 %v1185, %v1188
    %v1191 = vmul.u32 %v1186, %v1187
    %v1192 = vmul.u32 %v1186, %v1188
    %v1193 = vshll.u32 %v1190, 16
    %v1194 = vshrl.u32 %v1190, 16
    %v1195 = vshll.u32 %v1191, 16
    %v1196 = vshrl.u32 %v1191, 16
    %vm1197 = vc.u32 %v1189, %v1193
    %v1198 = vsel %vm1197, 1, 0
    %v1199 = vadd.s32 %v1189, %v1193
    %v1200 = vadd.s32 %v1192, %v1198
    %vm1201 = vc.u32 %v1199, %v1195
    %v1202 = vsel %vm1201, 1, 0
    %v1203 = vadd.s32 %v1199, %v1195
    %v1204 = vadd.s32 %v1200, %v1202
    %v1205 = vadd.s32 %v1204, %v1194
    %v1206 = vadd.s32 %v1205, %v1196
    %v1207 = vmul.u32 %v1162, %v1153
    %v1208 = vadd.s32 %v1184, %v1203
    %vm1209 = vc.u32 %v1184, %v1203
    %v1210 = vadd.s32 %v1206, 1
    %v1211 = vsel %vm1209, %v1210, %v1206
    %v1212 = vadd.s32 %v1207, %v1211
    %v1213 = vadd.s32 %v1212, 536870912
    %v1214 = vshrl.u32 %v1213, 30
    %v1215 = vshll.u32 %v1214, 30
    %v1216 = vsub.s32 %v1212, %v1215
    %vm1217 = vcmp.lt.s32.totalorder %v1216, 0
    %v1218 = vsub.s32 0, %v1216
    %v1219 = vsel %vm1217, %v1218, %v1216
    %v1220 = vclz %v1219
    %v1221 = vsub.s32 %v1220, 2
    %vm1222 = vcmp.gt.s32.totalorder 0, %v1221
    %v1223 = vsel %vm1222, 0, %v1221
    %v1224 = vsub.s32 32, %v1223
    %v1225 = vshll.u32 %v1216, %v1223
    %v1226 = vshrl.u32 %v1208, %v1224
    %v1227 = vor.u32 %v1225, %v1226
    %v1228 = vsub.s32 4294967266, %v1223
    %v1229 = vadd.s32 %v1228, 127
    %v1230 = vshll.u32 %v1229, 23
    %v1231 = vor.u32 4788187, %v1230
    %v1232 = vand.u32 2147483647, %v1231
    %v1234 = vcvt.s32.f32 %v1227
    %v1235 = vmul.f32 %v1234, %v1232
    %v1236 = vxor.u32 %v1235, 2147483648
    %v1237 = vsel %vm1116, %v1236, %v1235
    %v1238 = vsub.s32 4, %v1214
    %v1239 = vsel %vm1116, %v1238, %v1214
    %v1240 = vsel %vm1115, %v651, %v1237
    %v1241 = vsel %vm1115, 0, %v1239
    %v1242 = vmul.f32 %v1240, %v1240
    %v1243 = vmul.f32 %v1242, -0.001358992
    %v1244 = vadd.f32 %v1243, 0.041655596
    %v1245 = vmul.f32 %v1242, %v1244
    %v1246 = vadd.f32 %v1245, -0.4999988
    %v1247 = vmul.f32 %v1242, %v1246
    %v1248 = vadd.f32 1.0, %v1247
    %v1249 = vmul.f32 %v1240, %v1240
    %v1250 = vmul.f32 %v1249, -0.00019511016
    %v1251 = vadd.f32 %v1250, 0.008332121
    %v1252 = vmul.f32 %v1249, %v1251
    %v1253 = vadd.f32 %v1252, -0.16666654
    %v1254 = vmul.f32 %v1249, %v1253
    %v1255 = vadd.f32 %v1254, 1.0
    %v1256 = vmul.f32 %v1255, %v1240
    %vm1257 = vweird.f32 %v651
    %v1258 = vand.u32 %v1241, 3
    %vm1259 = vcmp.lt.s32.totalorder %v1258, 2
    %vm1260 = vcmp.eq.s32.totalorder %v1258, 0
    %v1261 = vxor.u32 %v1256, 2147483648
    %v1262 = vsel %vm1260, %v1248, %v1261
    %vm1263 = vcmp.eq.s32.totalorder %v1258, 2
    %v1264 = vxor.u32 %v1248, 2147483648
    %v1265 = vsel %vm1263, %v1264, %v1256
    %v1266 = vsel %vm1259, %v1262, %v1265
    %v1267 = vsel %vm1257, nan, %v1266
    %1268 = vst [vmem:[#allocation5] sm:$0xff] %v805
    %1269 = vst [vmem:[#allocation5 + $0x8] sm:$0xff] %v959
    %1270 = vst [vmem:[#allocation5 + $0x10] sm:$0xff] %v1113
    %1271 = vst [vmem:[#allocation5 + $0x18] sm:$0xff] %v1267
    // Predicated region
    $region18: #{tpu_custom_call.1} parent=1 // pred_check
      _
    $region19: #{tpu_custom_call.1} parent=1 // pred_check_branch
      %1273 = sbr.rel (0) target = $region21
    $region20: #{tpu_custom_call.1} parent=1 // pred_region
      %1275 = vsyncadd [#allocation4], 0
      %s1277 = sshll.u32 [#allocation5], 4
      %s1278 = int_to_ptr.vmem [resolvable:$true] %s1277
      %s1279 = sshll.u32 %s3, 4
      %s1280 = int_to_ptr.hbm [resolvable:$true] %s1279
      %1282 = dma.vmem_to_hbm [thread:$0]  %s1278, 512, %s1280, [#allocation4]
    $region21: #{tpu_custom_call.1} parent=1 // pred_fallthru
      _
    // Predicated region
    $region22: #{tpu_custom_call.1} parent=1 // pred_check
      _
    $region23: #{tpu_custom_call.1} parent=1 // pred_check_branch
      %1284 = sbr.rel (0) target = $region25
    $region24: #{tpu_custom_call.1} parent=1 // pred_region
      %1286 = dma.done [#allocation4], 512
    $region25: #{tpu_custom_call.1} parent=1 // pred_fallthru
      _
    %1287 = vsyncpa [#allocation3], 1
    %1288 = vsyncpa [#allocation4], 1

</llo_original>
